<compile_context>
chip_gen: v7x
topology: tpu7x:2x2x1
jax: 0.10.0
libtpu: 0.0.40
codegen_flags: <defaults>
</compile_context>

<pallas_src>
import functools

import jax
import jax.numpy as jnp
from jax.experimental import pallas as pl
from jax.experimental.pallas import tpu as pltpu

_LANE = 128      # vreg lane width
_SUBLANE = 8     # f32 sublane count


def _round_up(n, m):
    return ((n + m - 1) // m) * m


# --------------------------------------------------------------------------
# Kernel
# --------------------------------------------------------------------------
def _mlp_kernel(x_ref, *refs, slope, num_layers, compute_dtype):
    """Fully fused MLP on one row tile.

    refs = (w0, b0, w1, b1, ..., w_out, b_out, o_ref); everything is a
    VMEM-resident block.  The Python loop unrolls at trace time, so all
    intermediate activations stay in VMEM/vregs — no HBM traffic between
    layers, a single dispatch for the whole network.
    """
    o_ref = refs[-1]
    wb = refs[:-1]
    h = x_ref[...].astype(jnp.float32)
    for layer in range(num_layers):
        w = wb[2 * layer][...]
        b = wb[2 * layer + 1][...]                       # (1, N_pad) broadcasts over rows
        h = jnp.dot(h.astype(compute_dtype), w,
                    preferred_element_type=jnp.float32) + b.astype(jnp.float32)
        if layer < num_layers - 1:                       # hidden layers only
            if 0.0 <= slope <= 1.0:
                h = jnp.maximum(h, jnp.float32(slope) * h)   # mul+max (2 VALU ops)
            else:
                h = jnp.where(h >= 0, h, jnp.float32(slope) * h)
    o_ref[...] = h.astype(o_ref.dtype)


# --------------------------------------------------------------------------
# Parameters
# --------------------------------------------------------------------------
def init_params(layer_sizes, key):
    """nn.Linear-style uniform(-1/sqrt(fan_in), 1/sqrt(fan_in)) init.

    Weights are stored pre-transposed as (in_features, out_features) so the
    kernel computes x @ W + b (same math as PyTorch's x @ W.T + b).
    """
    hidden_dims = list(zip(layer_sizes[:-2], layer_sizes[1:]))   # len(layer_sizes)-2 hidden layers
    all_dims = hidden_dims + [(layer_sizes[-2], layer_sizes[-1])]

    params = []
    for fan_in, fan_out in all_dims:
        key, kw, kb = jax.random.split(key, 3)
        bound = 1.0 / (fan_in ** 0.5)
        w = jax.random.uniform(kw, (fan_in, fan_out), jnp.float32, -bound, bound)
        b = jax.random.uniform(kb, (fan_out,), jnp.float32, -bound, bound)
        params.append((w, b))
    return params


def pad_params(params, lane_multiple=_LANE, weights_dtype=jnp.float32):
    """Zero-pad every (K, N) weight to lane multiples and every bias to (1, N_pad).

    Done ONCE, not per forward call.  `weights_dtype=jnp.bfloat16` enables the
    bf16 MXU path (halves weight HBM/VMEM bytes; small numerical deviation from
    the f32 PyTorch reference).  `lane_multiple=256` fills the v6e/v7x MXU when
    hidden dims are already >= 256.
    """
    padded = []
    for w, b in params:
        k, n = w.shape
        kp, np_ = _round_up(k, lane_multiple), _round_up(n, lane_multiple)
        wp = jnp.zeros((kp, np_), weights_dtype).at[:k, :n].set(w.astype(weights_dtype))
        bp = jnp.zeros((1, np_), jnp.float32).at[:, :n].set(b)   # bias add stays f32
        padded.append((wp, bp))
    return padded


# --------------------------------------------------------------------------
# Forward
# --------------------------------------------------------------------------
def _pick_tm(m, tm_max):
    """Row-tile size: sublane-aligned, >=2 tiles for mid/large batches (v7x 2-TC)."""
    m_aligned = _round_up(m, _SUBLANE)
    if m_aligned <= 2 * _SUBLANE:
        return m_aligned                      # tiny batch: one tile, dispatch-bound anyway
    if m_aligned >= 2 * tm_max:
        return tm_max                         # many tiles; tm_max is 128-aligned
    # Split into (at least) two tiles so dimension_semantics=("parallel",)
    # can shard rows across v7x's two TensorCores; keep sublane alignment.
    return _round_up((m_aligned + 1) // 2, _SUBLANE)


def fully_connected_forward(x, padded_params, out_features, slope=0.01, tm_max=512):
    """Pallas-backed forward pass: the whole MLP in ONE pallas_call."""
    x = x.astype(jnp.float32)                 # mirrors x.float()
    M, K = x.shape
    w0 = padded_params[0][0]
    k0_pad = w0.shape[0]
    n_out_pad = padded_params[-1][0].shape[1]
    num_layers = len(padded_params)
    compute_dtype = w0.dtype                  # f32 (exact) or bf16 (opt-in)

    tm = _pick_tm(M, tm_max)
    m_pad = _round_up(M, tm)

    # Pad the input only if needed (skip the extra HBM read+write when aligned).
    pad_m, pad_k = m_pad - M, k0_pad - K
    x_in = jnp.pad(x, ((0, pad_m), (0, pad_k))) if (pad_m or pad_k) else x

    flat_wb = []
    weight_specs = []
    for w, b in padded_params:
        flat_wb += [w, b]
        # Grid-invariant blocks: DMA'd once, stay resident.  Buffered(1) avoids
        # pointless double-buffering (halves resident-weight VMEM).
        weight_specs.append(pl.BlockSpec(w.shape, lambda i: (0, 0),
                                         pipeline_mode=pl.Buffered(1)))
        weight_specs.append(pl.BlockSpec(b.shape, lambda i: (0, 0),
                                         pipeline_mode=pl.Buffered(1)))

    # ---- VMEM budget -------------------------------------------------------
    weight_bytes = sum(int(w.size) * w.dtype.itemsize + int(b.size) * b.dtype.itemsize
                       for w, b in padded_params)
    io_bytes = 2 * (tm * k0_pad + tm * n_out_pad) * 4      # double-buffered x / out tiles
    max_width = max(max(w.shape) for w, _ in padded_params)
    act_bytes = 2 * tm * max_width * 4                      # activation spill headroom
    needed = weight_bytes + io_bytes + act_bytes
    try:
        phys_vmem = pltpu.get_tpu_info().vmem_capacity_bytes
    except Exception:  # pragma: no cover - conservative fallback (v7x has 64 MiB/TC)
        phys_vmem = 64 * 1024 * 1024
    vmem_limit = int(min(max(int(needed * 1.25), 32 * 1024 * 1024), phys_vmem))
    # TODO(synk): if weight_bytes grows past ~1/2 of VMEM, switch to a K/N-tiled
    # weight-streaming pipeline (emit_pipeline) instead of full residency.

    # ---- Advisory cost estimate for XLA's scheduler -------------------------
    dims = [(w.shape[0], w.shape[1]) for w, _ in padded_params]
    flops = sum(2 * m_pad * k * n for k, n in dims)
    bytes_accessed = m_pad * k0_pad * 4 + weight_bytes + m_pad * n_out_pad * 4

    kernel = functools.partial(_mlp_kernel, slope=float(slope),
                               num_layers=num_layers, compute_dtype=compute_dtype)

    out_pad = pl.pallas_call(
        kernel,
        out_shape=jax.ShapeDtypeStruct((m_pad, n_out_pad), jnp.float32),
        grid=(m_pad // tm,),
        in_specs=[pl.BlockSpec((tm, k0_pad), lambda i: (i, 0))] + weight_specs,
        out_specs=pl.BlockSpec((tm, n_out_pad), lambda i: (i, 0)),
        compiler_params=pltpu.CompilerParams(
            dimension_semantics=("parallel",),   # shards row tiles over v7x's 2 TCs
            vmem_limit_bytes=vmem_limit,
        ),
        cost_estimate=pl.CostEstimate(
            flops=int(flops),
            transcendentals=0,
            bytes_accessed=int(bytes_accessed),
        ),
    )(x_in, *flat_wb)

    if m_pad == M and n_out_pad == out_features:
        return out_pad
    return out_pad[:M, :out_features]


# --------------------------------------------------------------------------
# Pure-JAX reference (unpadded) for correctness checking
# --------------------------------------------------------------------------
def _reference_forward(x, params, slope=0.01):
    x = x.astype(jnp.float32)
    *hidden, out = params
    for w, b in hidden:
        y = x @ w + b
        x = jnp.where(y >= 0, y, slope * y)
    w, b = out
    return x @ w + b


if __name__ == "__main__":
    key = jax.random.PRNGKey(0)
    key, kx, kx2, kp = jax.random.split(key, 4)

    # layer_sizes -> hidden Linear(32,64), Linear(64,48), output Linear(48,16).
    layer_sizes = [32, 64, 48, 16]
    slope = 0.01

    params = init_params(layer_sizes, kp)
    padded_params = pad_params(params)          # one-time padding (f32, lane=128)

    fwd = jax.jit(
        functools.partial(
            fully_connected_forward,
            out_features=layer_sizes[-1],
            slope=slope,
        )
    )

    # Small batch: single row tile.
    x = jax.random.normal(kx, (8, layer_sizes[0]), jnp.float32)
    out = jax.block_until_ready(fwd(x, padded_params))
    ref = _reference_forward(x, params, slope=slope)
    assert out.shape == (8, layer_sizes[-1]), out.shape
    assert jnp.allclose(out, ref, atol=1e-4, rtol=1e-4), "small-batch mismatch vs reference"

    # Larger batch: exercises the multi-tile grid (>=2 row tiles) + row padding path.
    x2 = jax.random.normal(kx2, (300, layer_sizes[0]), jnp.float32)
    out2 = jax.block_until_ready(fwd(x2, padded_params))
    ref2 = _reference_forward(x2, params, slope=slope)
    assert out2.shape == (300, layer_sizes[-1]), out2.shape
    assert jnp.allclose(out2, ref2, atol=1e-4, rtol=1e-4), "large-batch mismatch vs reference"

    print("KERNEL_OK")
</pallas_src>

<mosaic_0001>
module attributes {stable_mosaic.version = 11 : i64} {
  func.func @_mlp_kernel(%arg0: i32, %arg1: memref<8x128xf32, #tpu.memory_space<vmem>>, %arg2: memref<128x128xf32, #tpu.memory_space<vmem>>, %arg3: memref<1x128xf32, #tpu.memory_space<vmem>>, %arg4: memref<128x128xf32, #tpu.memory_space<vmem>>, %arg5: memref<1x128xf32, #tpu.memory_space<vmem>>, %arg6: memref<128x128xf32, #tpu.memory_space<vmem>>, %arg7: memref<1x128xf32, #tpu.memory_space<vmem>>, %arg8: memref<8x128xf32, #tpu.memory_space<vmem>>) attributes {dimension_semantics = [#tpu.dimension_semantics<parallel>], iteration_bounds = array<i64: 1>, scalar_prefetch = 0 : i64, scratch_operands = 0 : i64, tpu.core_type = #tpu.core_type<tc>, window_params = [{transform_indices = @transform_0, window_bounds = array<i64: 8, 128>}, {pipeline_mode = #tpu.pipeline_mode<synchronous>, transform_indices = @transform_1, window_bounds = array<i64: 128, 128>}, {pipeline_mode = #tpu.pipeline_mode<synchronous>, transform_indices = @transform_2, window_bounds = array<i64: 1, 128>}, {pipeline_mode = #tpu.pipeline_mode<synchronous>, transform_indices = @transform_3, window_bounds = array<i64: 128, 128>}, {pipeline_mode = #tpu.pipeline_mode<synchronous>, transform_indices = @transform_4, window_bounds = array<i64: 1, 128>}, {pipeline_mode = #tpu.pipeline_mode<synchronous>, transform_indices = @transform_5, window_bounds = array<i64: 128, 128>}, {pipeline_mode = #tpu.pipeline_mode<synchronous>, transform_indices = @transform_6, window_bounds = array<i64: 1, 128>}, {transform_indices = @transform_7, window_bounds = array<i64: 8, 128>}]} {
    %c0 = arith.constant 0 : index
    %c0_0 = arith.constant 0 : index
    %0 = vector.load %arg1[%c0, %c0_0] : memref<8x128xf32, #tpu.memory_space<vmem>>, vector<8x128xf32>
    %c0_1 = arith.constant 0 : index
    %c0_2 = arith.constant 0 : index
    %1 = vector.load %arg2[%c0_1, %c0_2] : memref<128x128xf32, #tpu.memory_space<vmem>>, vector<128x128xf32>
    %c0_3 = arith.constant 0 : index
    %c0_4 = arith.constant 0 : index
    %2 = vector.load %arg3[%c0_3, %c0_4] : memref<1x128xf32, #tpu.memory_space<vmem>>, vector<1x128xf32>
    %cst = arith.constant dense<0.000000e+00> : vector<8x128xf32>
    %3 = tpu.matmul %0, %1, %cst {dimension_numbers = #tpu.dot_dimension_numbers<[1], [0], [0], [1], [0, 0, 1, 1], [], []>} : vector<8x128xf32>, vector<128x128xf32>, vector<8x128xf32> -> vector<8x128xf32>
    %4 = vector.broadcast %2 : vector<1x128xf32> to vector<8x128xf32>
    %5 = arith.addf %3, %4 : vector<8x128xf32>
    %cst_5 = arith.constant 0.00999999977 : f32
    %6 = vector.broadcast %cst_5 : f32 to vector<8x128xf32>
    %7 = arith.mulf %6, %5 : vector<8x128xf32>
    %8 = arith.maximumf %5, %7 : vector<8x128xf32>
    %c0_6 = arith.constant 0 : index
    %c0_7 = arith.constant 0 : index
    %9 = vector.load %arg4[%c0_6, %c0_7] : memref<128x128xf32, #tpu.memory_space<vmem>>, vector<128x128xf32>
    %c0_8 = arith.constant 0 : index
    %c0_9 = arith.constant 0 : index
    %10 = vector.load %arg5[%c0_8, %c0_9] : memref<1x128xf32, #tpu.memory_space<vmem>>, vector<1x128xf32>
    %cst_10 = arith.constant dense<0.000000e+00> : vector<8x128xf32>
    %11 = tpu.matmul %8, %9, %cst_10 {dimension_numbers = #tpu.dot_dimension_numbers<[1], [0], [0], [1], [0, 0, 1, 1], [], []>} : vector<8x128xf32>, vector<128x128xf32>, vector<8x128xf32> -> vector<8x128xf32>
    %12 = vector.broadcast %10 : vector<1x128xf32> to vector<8x128xf32>
    %13 = arith.addf %11, %12 : vector<8x128xf32>
    %cst_11 = arith.constant 0.00999999977 : f32
    %14 = vector.broadcast %cst_11 : f32 to vector<8x128xf32>
    %15 = arith.mulf %14, %13 : vector<8x128xf32>
    %16 = arith.maximumf %13, %15 : vector<8x128xf32>
    %c0_12 = arith.constant 0 : index
    %c0_13 = arith.constant 0 : index
    %17 = vector.load %arg6[%c0_12, %c0_13] : memref<128x128xf32, #tpu.memory_space<vmem>>, vector<128x128xf32>
    %c0_14 = arith.constant 0 : index
    %c0_15 = arith.constant 0 : index
    %18 = vector.load %arg7[%c0_14, %c0_15] : memref<1x128xf32, #tpu.memory_space<vmem>>, vector<1x128xf32>
    %cst_16 = arith.constant dense<0.000000e+00> : vector<8x128xf32>
    %19 = tpu.matmul %16, %17, %cst_16 {dimension_numbers = #tpu.dot_dimension_numbers<[1], [0], [0], [1], [0, 0, 1, 1], [], []>} : vector<8x128xf32>, vector<128x128xf32>, vector<8x128xf32> -> vector<8x128xf32>
    %20 = vector.broadcast %18 : vector<1x128xf32> to vector<8x128xf32>
    %21 = arith.addf %19, %20 : vector<8x128xf32>
    %c0_17 = arith.constant 0 : index
    %c0_18 = arith.constant 0 : index
    %22 = vector.load %arg8[%c0_17, %c0_18] : memref<8x128xf32, #tpu.memory_space<vmem>>, vector<8x128xf32>
    tpu.vector_store %arg8[%c0_17, %c0_18], %21 {strides = array<i32>} : memref<8x128xf32, #tpu.memory_space<vmem>>, vector<8x128xf32>,
    return
  }
  func.func @transform_0(%arg0: i32) -> (i32, i32) {
    %c0_i32 = arith.constant 0 : i32
    %c0_i32_0 = arith.constant 0 : i32
    return %arg0, %c0_i32 : i32, i32
  }
  func.func @transform_1(%arg0: i32) -> (i32, i32) {
    %c0_i32 = arith.constant 0 : i32
    %c0_i32_0 = arith.constant 0 : i32
    %c0_i32_1 = arith.constant 0 : i32
    return %c0_i32, %c0_i32_0 : i32, i32
  }
  func.func @transform_2(%arg0: i32) -> (i32, i32) {
    %c0_i32 = arith.constant 0 : i32
    %c0_i32_0 = arith.constant 0 : i32
    %c0_i32_1 = arith.constant 0 : i32
    return %c0_i32, %c0_i32_0 : i32, i32
  }
  func.func @transform_3(%arg0: i32) -> (i32, i32) {
    %c0_i32 = arith.constant 0 : i32
    %c0_i32_0 = arith.constant 0 : i32
    %c0_i32_1 = arith.constant 0 : i32
    return %c0_i32, %c0_i32_0 : i32, i32
  }
  func.func @transform_4(%arg0: i32) -> (i32, i32) {
    %c0_i32 = arith.constant 0 : i32
    %c0_i32_0 = arith.constant 0 : i32
    %c0_i32_1 = arith.constant 0 : i32
    return %c0_i32, %c0_i32_0 : i32, i32
  }
  func.func @transform_5(%arg0: i32) -> (i32, i32) {
    %c0_i32 = arith.constant 0 : i32
    %c0_i32_0 = arith.constant 0 : i32
    %c0_i32_1 = arith.constant 0 : i32
    return %c0_i32, %c0_i32_0 : i32, i32
  }
  func.func @transform_6(%arg0: i32) -> (i32, i32) {
    %c0_i32 = arith.constant 0 : i32
    %c0_i32_0 = arith.constant 0 : i32
    %c0_i32_1 = arith.constant 0 : i32
    return %c0_i32, %c0_i32_0 : i32, i32
  }
  func.func @transform_7(%arg0: i32) -> (i32, i32) {
    %c0_i32 = arith.constant 0 : i32
    %c0_i32_0 = arith.constant 0 : i32
    return %arg0, %c0_i32 : i32, i32
  }
}

</mosaic_0001>

<llo_original>
// kernel: fully_connected_forward.1
$region0: #{fully_connected_forward.1}
  #allocation0 [shape = 'u32[]', space=smem, size = 0x4, offset = 0x4, fixed_abs, tag = 'smem constant byte address 0x4 - core index']
  #allocation1 [shape = 'u32[144,128]{1,0:T(1,128)}', space=vmem, size = 0x12000, scoped, tag = 'internal scratch']
  %s0 = inlined_call_operand.vmem [shape: f32[8,128], index: 0, kind: input, shape index: {}]
  %s1 = inlined_call_operand.hbm [shape: f32[128,128], index: 1, kind: input, shape index: {}]
  %s2 = inlined_call_operand.vmem [shape: f32[1,128], index: 2, kind: input, shape index: {}]
  %s3 = inlined_call_operand.hbm [shape: f32[128,128], index: 3, kind: input, shape index: {}]
  %s4 = inlined_call_operand.vmem [shape: f32[1,128], index: 4, kind: input, shape index: {}]
  %s5 = inlined_call_operand.hbm [shape: f32[128,128], index: 5, kind: input, shape index: {}]
  %s6 = inlined_call_operand.vmem [shape: f32[1,128], index: 6, kind: input, shape index: {}]
  %s7 = inlined_call_operand.hbm [shape: f32[8,128], index: 7, kind: output, shape index: {}]
  %s8 = sld [smem:[#allocation0]]
  $region50: #{fully_connected_forward.1} parent=0
    _
  %s10 = ssub.s32 1, %s8
  %s11 = scalar_select 0, %s10, %s8
  $region1: #{fully_connected_forward.1} parent=0
    #allocation2 [shape = 'u8[65536]{0}', space=vmem, size = 0x10000, scoped, tag = 'input window, operand 1, single buffered']
    #allocation3 [shape = 's32[1]{0}', space=sflag, size = 0x4, scoped, tag = 'scoped memory for fully_connected_forward.1']
    #allocation4 [shape = 's32[1]{0}', space=sflag, size = 0x4, scoped, tag = 'scoped memory for fully_connected_forward.1']
    #allocation5 [shape = 'u8[65536]{0}', space=vmem, size = 0x10000, scoped, tag = 'input window, operand 3, single buffered']
    #allocation6 [shape = 's32[1]{0}', space=sflag, size = 0x4, scoped, tag = 'scoped memory for fully_connected_forward.1']
    #allocation7 [shape = 'u8[65536]{0}', space=vmem, size = 0x10000, scoped, tag = 'input window, operand 5, single buffered']
    #allocation8 [shape = 'u8[4096]{0}', space=vmem, size = 0x1000, scoped, tag = 'output window, operand 0, single buffered']
    %12 = vsyncpa [#allocation3], 0
    %13 = vsyncpa [#allocation6], 0
    %14 = vsyncpa [#allocation4], 0
    // Predicated region
    $region2: #{fully_connected_forward.1} parent=1 // pred_check
      _
    $region3: #{fully_connected_forward.1} parent=1 // pred_check_branch
      %16 = sbr.rel (0) target = $region5
    $region4: #{fully_connected_forward.1} parent=1 // pred_region
      _
    $region5: #{fully_connected_forward.1} parent=1 // pred_fallthru
      _
    // Predicated region
    $region6: #{fully_connected_forward.1} parent=1 // pred_check
      _
    $region7: #{fully_connected_forward.1} parent=1 // pred_check_branch
      %18 = sbr.rel (0) target = $region9
    $region8: #{fully_connected_forward.1} parent=1 // pred_region
      %s20 = ssub.s32 2048, 2048
      %21 = vsyncadd [#allocation3], %s20
      %s22 = sshll.u32 [#allocation2], 4
      %s23 = int_to_ptr.vmem [resolvable:$true] %s22
      %28 = dma.hbm_to_vmem [thread:$0]  %s1, 2048, %s23, [#allocation3], 128, 128, 8
    $region9: #{fully_connected_forward.1} parent=1 // pred_fallthru
      _
    // Predicated region
    $region10: #{fully_connected_forward.1} parent=1 // pred_check
      _
    $region11: #{fully_connected_forward.1} parent=1 // pred_check_branch
      %30 = sbr.rel (0) target = $region13
    $region12: #{fully_connected_forward.1} parent=1 // pred_region
      _
    $region13: #{fully_connected_forward.1} parent=1 // pred_fallthru
      _
    // Predicated region
    $region14: #{fully_connected_forward.1} parent=1 // pred_check
      _
    $region15: #{fully_connected_forward.1} parent=1 // pred_check_branch
      %32 = sbr.rel (0) target = $region17
    $region16: #{fully_connected_forward.1} parent=1 // pred_region
      %s34 = ssub.s32 2048, 2048
      %35 = vsyncadd [#allocation6], %s34
      %s36 = sshll.u32 [#allocation5], 4
      %s37 = int_to_ptr.vmem [resolvable:$true] %s36
      %42 = dma.hbm_to_vmem [thread:$0]  %s3, 2048, %s37, [#allocation6], 128, 128, 8
    $region17: #{fully_connected_forward.1} parent=1 // pred_fallthru
      _
    // Predicated region
    $region18: #{fully_connected_forward.1} parent=1 // pred_check
      _
    $region19: #{fully_connected_forward.1} parent=1 // pred_check_branch
      %44 = sbr.rel (0) target = $region21
    $region20: #{fully_connected_forward.1} parent=1 // pred_region
      _
    $region21: #{fully_connected_forward.1} parent=1 // pred_fallthru
      _
    // Predicated region
    $region22: #{fully_connected_forward.1} parent=1 // pred_check
      _
    $region23: #{fully_connected_forward.1} parent=1 // pred_check_branch
      %46 = sbr.rel (0) target = $region25
    $region24: #{fully_connected_forward.1} parent=1 // pred_region
      %s48 = ssub.s32 2048, 2048
      %49 = vsyncadd [#allocation6], %s48
      %s50 = sshll.u32 [#allocation7], 4
      %s51 = int_to_ptr.vmem [resolvable:$true] %s50
      %56 = dma.hbm_to_vmem [thread:$0]  %s5, 2048, %s51, [#allocation6], 128, 128, 8
    $region25: #{fully_connected_forward.1} parent=1 // pred_fallthru
      _
    // Predicated region
    $region26: #{fully_connected_forward.1} parent=1 // pred_check
      _
    $region27: #{fully_connected_forward.1} parent=1 // pred_check_branch
      %58 = sbr.rel (0) target = $region29
    $region28: #{fully_connected_forward.1} parent=1 // pred_region
      _
    $region29: #{fully_connected_forward.1} parent=1 // pred_fallthru
      _
    // Predicated region
    $region30: #{fully_connected_forward.1} parent=1 // pred_check
      _
    $region31: #{fully_connected_forward.1} parent=1 // pred_check_branch
      %60 = sbr.rel (0) target = $region33
    $region32: #{fully_connected_forward.1} parent=1 // pred_region
      %61 = dma.done [#allocation3], 2048
    $region33: #{fully_connected_forward.1} parent=1 // pred_fallthru
      _
    // Predicated region
    $region34: #{fully_connected_forward.1} parent=1 // pred_check
      _
    $region35: #{fully_connected_forward.1} parent=1 // pred_check_branch
      %63 = sbr.rel (0) target = $region37
    $region36: #{fully_connected_forward.1} parent=1 // pred_region
      %64 = dma.done [#allocation6], 2048
    $region37: #{fully_connected_forward.1} parent=1 // pred_fallthru
      _
    // Predicated region
    $region38: #{fully_connected_forward.1} parent=1 // pred_check
      _
    $region39: #{fully_connected_forward.1} parent=1 // pred_check_branch
      %66 = sbr.rel (0) target = $region41
    $region40: #{fully_connected_forward.1} parent=1 // pred_region
      %67 = dma.done [#allocation6], 2048
    $region41: #{fully_connected_forward.1} parent=1 // pred_fallthru
      _
    %v68 = vld [vmem:[%s0] sm:$0xff]
    %v69 = vld [vmem:[#allocation2] sm:$0xff]
    %v70 = vld [vmem:[#allocation2 + $0x8] sm:$0xff]
    %v71 = vld [vmem:[#allocation2 + $0x10] sm:$0xff]
    %v72 = vld [vmem:[#allocation2 + $0x18] sm:$0xff]
    %v73 = vld [vmem:[#allocation2 + $0x20] sm:$0xff]
    %v74 = vld [vmem:[#allocation2 + $0x28] sm:$0xff]
    %v75 = vld [vmem:[#allocation2 + $0x30] sm:$0xff]
    %v76 = vld [vmem:[#allocation2 + $0x38] sm:$0xff]
    %v77 = vld [vmem:[#allocation2 + $0x40] sm:$0xff]
    %v78 = vld [vmem:[#allocation2 + $0x48] sm:$0xff]
    %v79 = vld [vmem:[#allocation2 + $0x50] sm:$0xff]
    %v80 = vld [vmem:[#allocation2 + $0x58] sm:$0xff]
    %v81 = vld [vmem:[#allocation2 + $0x60] sm:$0xff]
    %v82 = vld [vmem:[#allocation2 + $0x68] sm:$0xff]
    %v83 = vld [vmem:[#allocation2 + $0x70] sm:$0xff]
    %v84 = vld [vmem:[#allocation2 + $0x78] sm:$0xff]
    %v85 = vld [vmem:[%s2] sm:$0x1]
    %v87 = vlaneseq
    %v88 = vshrl.u32 %v87, 7
    %v89 = vsub.s32 0, %v88
    %v90 = vrot.slane %v85, %v89
    %92 = vmatprep.subr.mxu0 0.0
    %93 = vmatpush1.msra.mxu0 %v69
    %94 = vmatprep.subr.mxu0 0.0
    %95 = vmatpush1.msra.mxu0 %v70
    %96 = vmatprep.subr.mxu0 0.0
    %97 = vmatpush1.msra.mxu0 %v71
    %98 = vmatprep.subr.mxu0 0.0
    %99 = vmatpush1.msra.mxu0 %v72
    %100 = vmatprep.subr.mxu0 0.0
    %101 = vmatpush1.msra.mxu0 %v73
    %102 = vmatprep.subr.mxu0 0.0
    %103 = vmatpush1.msra.mxu0 %v74
    %104 = vmatprep.subr.mxu0 0.0
    %105 = vmatpush1.msra.mxu0 %v75
    %106 = vmatprep.subr.mxu0 0.0
    %107 = vmatpush1.msra.mxu0 %v76
    %108 = vmatprep.subr.mxu0 0.0
    %109 = vmatpush1.msra.mxu0 %v77
    %110 = vmatprep.subr.mxu0 0.0
    %111 = vmatpush1.msra.mxu0 %v78
    %112 = vmatprep.subr.mxu0 0.0
    %113 = vmatpush1.msra.mxu0 %v79
    %114 = vmatprep.subr.mxu0 0.0
    %115 = vmatpush1.msra.mxu0 %v80
    %116 = vmatprep.subr.mxu0 0.0
    %117 = vmatpush1.msra.mxu0 %v81
    %118 = vmatprep.subr.mxu0 0.0
    %119 = vmatpush1.msra.mxu0 %v82
    %120 = vmatprep.subr.mxu0 0.0
    %121 = vmatpush1.msra.mxu0 %v83
    %122 = vmatprep.subr.mxu0 0.0
    %123 = vmatpush1.msra.mxu0 %v84
    %124 = vmatprep.subr.mxu0 0.0
    %125 = vmatpush1.msra.mxu0 0.0
    %126 = vmatprep.subr.mxu0 0.0
    %127 = vmatpush1.msra.mxu0 0.0
    %128 = vmatprep.subr.mxu0 0.0
    %129 = vmatpush1.msra.mxu0 0.0
    %130 = vmatprep.subr.mxu0 0.0
    %131 = vmatpush1.msra.mxu0 0.0
    %132 = vmatprep.subr.mxu0 0.0
    %133 = vmatpush1.msra.mxu0 0.0
    %134 = vmatprep.subr.mxu0 0.0
    %135 = vmatpush1.msra.mxu0 0.0
    %136 = vmatprep.subr.mxu0 0.0
    %137 = vmatpush1.msra.mxu0 0.0
    %138 = vmatprep.subr.mxu0 0.0
    %139 = vmatpush1.msra.mxu0 0.0
    %140 = vmatprep.subr.mxu0 0.0
    %141 = vmatpush1.msra.mxu0 0.0
    %142 = vmatprep.subr.mxu0 0.0
    %143 = vmatpush1.msra.mxu0 0.0
    %144 = vmatprep.subr.mxu0 0.0
    %145 = vmatpush1.msra.mxu0 0.0
    %146 = vmatprep.subr.mxu0 0.0
    %147 = vmatpush1.msra.mxu0 0.0
    %148 = vmatprep.subr.mxu0 0.0
    %149 = vmatpush1.msra.mxu0 0.0
    %150 = vmatprep.subr.mxu0 0.0
    %151 = vmatpush1.msra.mxu0 0.0
    %152 = vmatprep.subr.mxu0 0.0
    %153 = vmatpush1.msra.mxu0 0.0
    %154 = vmatprep.subr.mxu0 0.0
    %155 = vmatpush1.msra.mxu0 0.0
    %156 = vmatprep.mubr.f32.mxu0 0.0
    %157 = vmatmul.mubr.f32.gmra.mrb[0].mxu0 %v68
    %v158 = vpop.f32.mrb[0].mxu0
    %v159 = vadd.f32 %v90, %v158
    %v160 = vpop.f32.mrb[0].mxu0
    %161 = vdwg.mxu0
    %v162 = vmul.f32 %v159, 0.01
    %v163 = vmax.f32 %v159, %v162
    %v164 = vld [vmem:[#allocation5] sm:$0xff]
    %v165 = vld [vmem:[#allocation5 + $0x8] sm:$0xff]
    %v166 = vld [vmem:[#allocation5 + $0x10] sm:$0xff]
    %v167 = vld [vmem:[#allocation5 + $0x18] sm:$0xff]
    %v168 = vld [vmem:[#allocation5 + $0x20] sm:$0xff]
    %v169 = vld [vmem:[#allocation5 + $0x28] sm:$0xff]
    %v170 = vld [vmem:[#allocation5 + $0x30] sm:$0xff]
    %v171 = vld [vmem:[#allocation5 + $0x38] sm:$0xff]
    %v172 = vld [vmem:[#allocation5 + $0x40] sm:$0xff]
    %v173 = vld [vmem:[#allocation5 + $0x48] sm:$0xff]
    %v174 = vld [vmem:[#allocation5 + $0x50] sm:$0xff]
    %v175 = vld [vmem:[#allocation5 + $0x58] sm:$0xff]
    %v176 = vld [vmem:[#allocation5 + $0x60] sm:$0xff]
    %v177 = vld [vmem:[#allocation5 + $0x68] sm:$0xff]
    %v178 = vld [vmem:[#allocation5 + $0x70] sm:$0xff]
    %v179 = vld [vmem:[#allocation5 + $0x78] sm:$0xff]
    %v180 = vld [vmem:[%s4] sm:$0x1]
    %v182 = vlaneseq
    %v183 = vshrl.u32 %v182, 7
    %v184 = vsub.s32 0, %v183
    %v185 = vrot.slane %v180, %v184
    %187 = vmatprep.subr.mxu0 0.0
    %188 = vmatpush1.msra.mxu0 %v164
    %189 = vmatprep.subr.mxu0 0.0
    %190 = vmatpush1.msra.mxu0 %v165
    %191 = vmatprep.subr.mxu0 0.0
    %192 = vmatpush1.msra.mxu0 %v166
    %193 = vmatprep.subr.mxu0 0.0
    %194 = vmatpush1.msra.mxu0 %v167
    %195 = vmatprep.subr.mxu0 0.0
    %196 = vmatpush1.msra.mxu0 %v168
    %197 = vmatprep.subr.mxu0 0.0
    %198 = vmatpush1.msra.mxu0 %v169
    %199 = vmatprep.subr.mxu0 0.0
    %200 = vmatpush1.msra.mxu0 %v170
    %201 = vmatprep.subr.mxu0 0.0
    %202 = vmatpush1.msra.mxu0 %v171
    %203 = vmatprep.subr.mxu0 0.0
    %204 = vmatpush1.msra.mxu0 %v172
    %205 = vmatprep.subr.mxu0 0.0
    %206 = vmatpush1.msra.mxu0 %v173
    %207 = vmatprep.subr.mxu0 0.0
    %208 = vmatpush1.msra.mxu0 %v174
    %209 = vmatprep.subr.mxu0 0.0
    %210 = vmatpush1.msra.mxu0 %v175
    %211 = vmatprep.subr.mxu0 0.0
    %212 = vmatpush1.msra.mxu0 %v176
    %213 = vmatprep.subr.mxu0 0.0
    %214 = vmatpush1.msra.mxu0 %v177
    %215 = vmatprep.subr.mxu0 0.0
    %216 = vmatpush1.msra.mxu0 %v178
    %217 = vmatprep.subr.mxu0 0.0
    %218 = vmatpush1.msra.mxu0 %v179
    %219 = vmatprep.subr.mxu0 0.0
    %220 = vmatpush1.msra.mxu0 0.0
    %221 = vmatprep.subr.mxu0 0.0
    %222 = vmatpush1.msra.mxu0 0.0
    %223 = vmatprep.subr.mxu0 0.0
    %224 = vmatpush1.msra.mxu0 0.0
    %225 = vmatprep.subr.mxu0 0.0
    %226 = vmatpush1.msra.mxu0 0.0
    %227 = vmatprep.subr.mxu0 0.0
    %228 = vmatpush1.msra.mxu0 0.0
    %229 = vmatprep.subr.mxu0 0.0
    %230 = vmatpush1.msra.mxu0 0.0
    %231 = vmatprep.subr.mxu0 0.0
    %232 = vmatpush1.msra.mxu0 0.0
    %233 = vmatprep.subr.mxu0 0.0
    %234 = vmatpush1.msra.mxu0 0.0
    %235 = vmatprep.subr.mxu0 0.0
    %236 = vmatpush1.msra.mxu0 0.0
    %237 = vmatprep.subr.mxu0 0.0
    %238 = vmatpush1.msra.mxu0 0.0
    %239 = vmatprep.subr.mxu0 0.0
    %240 = vmatpush1.msra.mxu0 0.0
    %241 = vmatprep.subr.mxu0 0.0
    %242 = vmatpush1.msra.mxu0 0.0
    %243 = vmatprep.subr.mxu0 0.0
    %244 = vmatpush1.msra.mxu0 0.0
    %245 = vmatprep.subr.mxu0 0.0
    %246 = vmatpush1.msra.mxu0 0.0
    %247 = vmatprep.subr.mxu0 0.0
    %248 = vmatpush1.msra.mxu0 0.0
    %249 = vmatprep.subr.mxu0 0.0
    %250 = vmatpush1.msra.mxu0 0.0
    %251 = vmatprep.mubr.f32.mxu0 0.0
    %252 = vmatmul.mubr.f32.gmra.mrb[0].mxu0 %v163
    %v253 = vpop.f32.mrb[0].mxu0
    %v254 = vadd.f32 %v185, %v253
    %v255 = vpop.f32.mrb[0].mxu0
    %256 = vdwg.mxu0
    %v257 = vmul.f32 %v254, 0.01
    %v258 = vmax.f32 %v254, %v257
    %v259 = vld [vmem:[#allocation7] sm:$0xff]
    %v260 = vld [vmem:[#allocation7 + $0x8] sm:$0xff]
    %v261 = vld [vmem:[#allocation7 + $0x10] sm:$0xff]
    %v262 = vld [vmem:[#allocation7 + $0x18] sm:$0xff]
    %v263 = vld [vmem:[#allocation7 + $0x20] sm:$0xff]
    %v264 = vld [vmem:[#allocation7 + $0x28] sm:$0xff]
    %v265 = vld [vmem:[#allocation7 + $0x30] sm:$0xff]
    %v266 = vld [vmem:[#allocation7 + $0x38] sm:$0xff]
    %v267 = vld [vmem:[#allocation7 + $0x40] sm:$0xff]
    %v268 = vld [vmem:[#allocation7 + $0x48] sm:$0xff]
    %v269 = vld [vmem:[#allocation7 + $0x50] sm:$0xff]
    %v270 = vld [vmem:[#allocation7 + $0x58] sm:$0xff]
    %v271 = vld [vmem:[#allocation7 + $0x60] sm:$0xff]
    %v272 = vld [vmem:[#allocation7 + $0x68] sm:$0xff]
    %v273 = vld [vmem:[#allocation7 + $0x70] sm:$0xff]
    %v274 = vld [vmem:[#allocation7 + $0x78] sm:$0xff]
    %v275 = vld [vmem:[%s6] sm:$0x1]
    %v277 = vlaneseq
    %v278 = vshrl.u32 %v277, 7
    %v279 = vsub.s32 0, %v278
    %v280 = vrot.slane %v275, %v279
    %282 = vmatprep.subr.mxu0 0.0
    %283 = vmatpush1.msra.mxu0 %v259
    %284 = vmatprep.subr.mxu0 0.0
    %285 = vmatpush1.msra.mxu0 %v260
    %286 = vmatprep.subr.mxu0 0.0
    %287 = vmatpush1.msra.mxu0 %v261
    %288 = vmatprep.subr.mxu0 0.0
    %289 = vmatpush1.msra.mxu0 %v262
    %290 = vmatprep.subr.mxu0 0.0
    %291 = vmatpush1.msra.mxu0 %v263
    %292 = vmatprep.subr.mxu0 0.0
    %293 = vmatpush1.msra.mxu0 %v264
    %294 = vmatprep.subr.mxu0 0.0
    %295 = vmatpush1.msra.mxu0 %v265
    %296 = vmatprep.subr.mxu0 0.0
    %297 = vmatpush1.msra.mxu0 %v266
    %298 = vmatprep.subr.mxu0 0.0
    %299 = vmatpush1.msra.mxu0 %v267
    %300 = vmatprep.subr.mxu0 0.0
    %301 = vmatpush1.msra.mxu0 %v268
    %302 = vmatprep.subr.mxu0 0.0
    %303 = vmatpush1.msra.mxu0 %v269
    %304 = vmatprep.subr.mxu0 0.0
    %305 = vmatpush1.msra.mxu0 %v270
    %306 = vmatprep.subr.mxu0 0.0
    %307 = vmatpush1.msra.mxu0 %v271
    %308 = vmatprep.subr.mxu0 0.0
    %309 = vmatpush1.msra.mxu0 %v272
    %310 = vmatprep.subr.mxu0 0.0
    %311 = vmatpush1.msra.mxu0 %v273
    %312 = vmatprep.subr.mxu0 0.0
    %313 = vmatpush1.msra.mxu0 %v274
    %314 = vmatprep.subr.mxu0 0.0
    %315 = vmatpush1.msra.mxu0 0.0
    %316 = vmatprep.subr.mxu0 0.0
    %317 = vmatpush1.msra.mxu0 0.0
    %318 = vmatprep.subr.mxu0 0.0
    %319 = vmatpush1.msra.mxu0 0.0
    %320 = vmatprep.subr.mxu0 0.0
    %321 = vmatpush1.msra.mxu0 0.0
    %322 = vmatprep.subr.mxu0 0.0
    %323 = vmatpush1.msra.mxu0 0.0
    %324 = vmatprep.subr.mxu0 0.0
    %325 = vmatpush1.msra.mxu0 0.0
    %326 = vmatprep.subr.mxu0 0.0
    %327 = vmatpush1.msra.mxu0 0.0
    %328 = vmatprep.subr.mxu0 0.0
    %329 = vmatpush1.msra.mxu0 0.0
    %330 = vmatprep.subr.mxu0 0.0
    %331 = vmatpush1.msra.mxu0 0.0
    %332 = vmatprep.subr.mxu0 0.0
    %333 = vmatpush1.msra.mxu0 0.0
    %334 = vmatprep.subr.mxu0 0.0
    %335 = vmatpush1.msra.mxu0 0.0
    %336 = vmatprep.subr.mxu0 0.0
    %337 = vmatpush1.msra.mxu0 0.0
    %338 = vmatprep.subr.mxu0 0.0
    %339 = vmatpush1.msra.mxu0 0.0
    %340 = vmatprep.subr.mxu0 0.0
    %341 = vmatpush1.msra.mxu0 0.0
    %342 = vmatprep.subr.mxu0 0.0
    %343 = vmatpush1.msra.mxu0 0.0
    %344 = vmatprep.subr.mxu0 0.0
    %345 = vmatpush1.msra.mxu0 0.0
    %346 = vmatprep.mubr.f32.mxu0 0.0
    %347 = vmatmul.mubr.f32.gmra.mrb[0].mxu0 %v258
    %v348 = vpop.f32.mrb[0].mxu0
    %v349 = vadd.f32 %v280, %v348
    %v350 = vpop.f32.mrb[0].mxu0
    %351 = vdwg.mxu0
    %352 = vst [vmem:[#allocation8] sm:$0xff] %v349
    // Predicated region
    $region42: #{fully_connected_forward.1} parent=1 // pred_check
      _
    $region43: #{fully_connected_forward.1} parent=1 // pred_check_branch
      %354 = sbr.rel (0) target = $region45
    $region44: #{fully_connected_forward.1} parent=1 // pred_region
      %s356 = ssub.s32 128, 128
      %357 = vsyncadd [#allocation4], %s356
      %s359 = sshll.u32 [#allocation8], 4
      %s360 = int_to_ptr.vmem [resolvable:$true] %s359
      %362 = dma.vmem_to_hbm [thread:$0]  %s360, 128, %s7, [#allocation4]
    $region45: #{fully_connected_forward.1} parent=1 // pred_fallthru
      _
    // Predicated region
    $region46: #{fully_connected_forward.1} parent=1 // pred_check
      _
    $region47: #{fully_connected_forward.1} parent=1 // pred_check_branch
      %364 = sbr.rel (0) target = $region49
    $region48: #{fully_connected_forward.1} parent=1 // pred_region
      %365 = dma.done [#allocation4], 128
    $region49: #{fully_connected_forward.1} parent=1 // pred_fallthru
      _
    %366 = vsyncpa [#allocation3], 1
    %367 = vsyncpa [#allocation6], 1
    %368 = vsyncpa [#allocation4], 1

</llo_original>
